<compile_context>
chip_gen: v7x
topology: tpu7x:2x2x1
jax: 0.10.0
libtpu: 0.0.40
codegen_flags: <defaults>
</compile_context>

<pallas_src>
import functools

import jax
import jax.numpy as jnp
from jax.experimental import pallas as pl
from jax.experimental.pallas import tpu as pltpu


def _round_up(x, m):
    return ((x + m - 1) // m) * m


def mlp_kernel(xt_ref, w1_ref, b1_ref, w2_ref, b2_ref,
               w3_ref, b3_ref, w4_ref, b4_ref, o_ref):
    # Activations are (features, TILE_B): batch on the lane axis throughout.
    xt = xt_ref[...].astype(jnp.bfloat16)                                   # (10, TILE_B)

    # fc1: (256, 10) @ (10, TILE_B) -> (256, TILE_B), f32 accumulation on the MXU.
    h = jnp.dot(w1_ref[...], xt, preferred_element_type=jnp.float32) + b1_ref[...]
    h = jnp.maximum(h, 0.0)

    # fc2: (256, 256) @ (256, TILE_B)
    h = jnp.dot(w2_ref[...], h.astype(jnp.bfloat16),
                preferred_element_type=jnp.float32) + b2_ref[...]
    h = jnp.maximum(h, 0.0)

    # fc3: (10, 256) @ (256, TILE_B)
    h = jnp.dot(w3_ref[...], h.astype(jnp.bfloat16),
                preferred_element_type=jnp.float32) + b3_ref[...]
    h = jnp.maximum(h, 0.0)                                                 # (10, TILE_B)

    # fc4 (10 -> 1): M=1 / K=10 would waste an entire MXU pass, so do it on the
    # VPU/XLU: broadcast-multiply by the (10, 1) weight column and reduce sublanes.
    y = jnp.sum(h * w4_ref[...], axis=0, keepdims=True) + b4_ref[...]       # (1, TILE_B)
    o_ref[...] = y.astype(o_ref.dtype)


@functools.partial(jax.jit, static_argnames=("tile_b",))
def _rob_predictor_call(xt, w1, b1, w2, b2, w3, b3, w4, b4, *, tile_b):
    bp = xt.shape[1]
    grid = (bp // tile_b,)

    # MXU operands in bf16 (f32 accumulation inside the kernel); biases and the
    # VPU-path fc4 weight stay f32.  Weights keep PyTorch (out, in) layout.
    w1b = w1.astype(jnp.bfloat16)          # (256, 10)
    w2b = w2.astype(jnp.bfloat16)          # (256, 256)
    w3b = w3.astype(jnp.bfloat16)          # (10, 256)
    b1c = b1.reshape(-1, 1)                # (256, 1)
    b2c = b2.reshape(-1, 1)                # (256, 1)
    b3c = b3.reshape(-1, 1)                # (10, 1)
    w4c = w4.reshape(-1, 1)                # (10, 1) column for the VPU path
    b4c = b4.reshape(1, 1)                 # (1, 1)

    const = lambda i: (0, 0)               # weights/biases VMEM-resident across grid
    in_specs = [
        pl.BlockSpec((10, tile_b), lambda i: (0, i)),   # x^T streams per batch tile
        pl.BlockSpec((256, 10), const),                 # W1
        pl.BlockSpec((256, 1), const),                  # b1
        pl.BlockSpec((256, 256), const),                # W2
        pl.BlockSpec((256, 1), const),                  # b2
        pl.BlockSpec((10, 256), const),                 # W3
        pl.BlockSpec((10, 1), const),                   # b3
        pl.BlockSpec((10, 1), const),                   # W4 column
        pl.BlockSpec((1, 1), const),                    # b4
    ]
    out_specs = pl.BlockSpec((1, tile_b), lambda i: (0, i))   # lane-dense output

    flops = 2 * bp * (10 * 256 + 256 * 256 + 256 * 10 + 10)
    bytes_accessed = (
        xt.size * 4
        + (256 * 10 + 256 * 256 + 10 * 256) * 2        # bf16 weights
        + (256 + 256 + 10 + 10 + 1) * 4                 # biases + fc4 weight (f32)
        + bp * 4                                         # output
    )

    return pl.pallas_call(
        mlp_kernel,
        out_shape=jax.ShapeDtypeStruct((1, bp), jnp.float32),
        grid=grid,
        in_specs=in_specs,
        out_specs=out_specs,
        compiler_params=pltpu.CompilerParams(
            dimension_semantics=("parallel",),           # megacore sharding on v7x
        ),
        cost_estimate=pl.CostEstimate(
            flops=flops, transcendentals=0, bytes_accessed=bytes_accessed),
    )(xt, w1b, b1c, w2b, b2c, w3b, b3c, w4c, b4c)


def rob_predictor_forward(x, params, *, max_tile_b=2048):
    (w1, b1, w2, b2, w3, b3, w4, b4) = params
    B = x.shape[0]
    # TILE_B: multiple of 256 (lane-aligned and MXU-friendly), capped so the
    # (256, TILE_B) f32 intermediates stay comfortably under the scoped VMEM limit
    # even double-buffered.
    tile_b = min(max_tile_b, _round_up(B, 256))
    bp = _round_up(B, tile_b)
    if bp != B:
        x = jnp.pad(x, ((0, bp - B), (0, 0)))
    xt = x.T                                            # (10, bp): batch on the lane axis
    out = _rob_predictor_call(xt, w1, b1, w2, b2, w3, b3, w4, b4, tile_b=tile_b)
    return out.reshape(bp, 1)[:B]


def init_params(key):
    # Deterministic synthetic init, PyTorch layout: W is (out, in), b is (out,),
    # uniform(-1/sqrt(fan_in), +1/sqrt(fan_in)).
    def linear(key, fan_in, fan_out):
        kw, kb = jax.random.split(key)
        bound = 1.0 / (fan_in ** 0.5)
        w = jax.random.uniform(kw, (fan_out, fan_in), jnp.float32, -bound, bound)
        b = jax.random.uniform(kb, (fan_out,), jnp.float32, -bound, bound)
        return w, b

    k1, k2, k3, k4 = jax.random.split(key, 4)
    w1, b1 = linear(k1, 10, 256)
    w2, b2 = linear(k2, 256, 256)
    w3, b3 = linear(k3, 256, 10)
    w4, b4 = linear(k4, 10, 1)
    return (w1, b1, w2, b2, w3, b3, w4, b4)


def reference_forward(x, params):
    # Pure f32 reference matching the original PyTorch module semantics.
    (w1, b1, w2, b2, w3, b3, w4, b4) = params
    h = jnp.maximum(x @ w1.T + b1, 0.0)
    h = jnp.maximum(h @ w2.T + b2, 0.0)
    h = jnp.maximum(h @ w3.T + b3, 0.0)
    return h @ w4.T + b4


if __name__ == "__main__":
    key = jax.random.PRNGKey(0)
    kx, kp = jax.random.split(key)
    B = 8
    x = jax.random.normal(kx, (B, 10), jnp.float32)
    params = init_params(kp)

    out = rob_predictor_forward(x, params)
    out = jax.block_until_ready(out)

    ref = reference_forward(x, params)
    assert out.shape == (B, 1), out.shape
    # bf16 matmul operands with f32 accumulation -> slightly looser tolerance than f32.
    assert jnp.allclose(out, ref, atol=2e-2, rtol=2e-2), (out, ref)
    print("KERNEL_OK")
</pallas_src>

<mosaic_0001>
module attributes {stable_mosaic.version = 11 : i64} {
  func.func @mlp_kernel(%arg0: i32, %arg1: memref<10x256xf32, #tpu.memory_space<vmem>>, %arg2: memref<256x10xbf16, #tpu.memory_space<vmem>>, %arg3: memref<256x1xf32, #tpu.memory_space<vmem>>, %arg4: memref<256x256xbf16, #tpu.memory_space<vmem>>, %arg5: memref<256x1xf32, #tpu.memory_space<vmem>>, %arg6: memref<10x256xbf16, #tpu.memory_space<vmem>>, %arg7: memref<10x1xf32, #tpu.memory_space<vmem>>, %arg8: memref<10x1xf32, #tpu.memory_space<vmem>>, %arg9: memref<1x1xf32, #tpu.memory_space<vmem>>, %arg10: memref<1x256xf32, #tpu.memory_space<vmem>>) attributes {dimension_semantics = [#tpu.dimension_semantics<parallel>], iteration_bounds = array<i64: 1>, scalar_prefetch = 0 : i64, scratch_operands = 0 : i64, tpu.core_type = #tpu.core_type<tc>, window_params = [{transform_indices = @transform_0, window_bounds = array<i64: 10, 256>}, {pipeline_mode = #tpu.pipeline_mode<synchronous>, transform_indices = @transform_1, window_bounds = array<i64: 256, 10>}, {pipeline_mode = #tpu.pipeline_mode<synchronous>, transform_indices = @transform_2, window_bounds = array<i64: 256, 1>}, {pipeline_mode = #tpu.pipeline_mode<synchronous>, transform_indices = @transform_3, window_bounds = array<i64: 256, 256>}, {pipeline_mode = #tpu.pipeline_mode<synchronous>, transform_indices = @transform_4, window_bounds = array<i64: 256, 1>}, {pipeline_mode = #tpu.pipeline_mode<synchronous>, transform_indices = @transform_5, window_bounds = array<i64: 10, 256>}, {pipeline_mode = #tpu.pipeline_mode<synchronous>, transform_indices = @transform_6, window_bounds = array<i64: 10, 1>}, {pipeline_mode = #tpu.pipeline_mode<synchronous>, transform_indices = @transform_7, window_bounds = array<i64: 10, 1>}, {pipeline_mode = #tpu.pipeline_mode<synchronous>, transform_indices = @transform_8, window_bounds = array<i64: 1, 1>}, {transform_indices = @transform_9, window_bounds = array<i64: 1, 256>}]} {
    %c0 = arith.constant 0 : index
    %c0_0 = arith.constant 0 : index
    %0 = vector.load %arg1[%c0, %c0_0] : memref<10x256xf32, #tpu.memory_space<vmem>>, vector<10x256xf32>
    %1 = arith.truncf %0 : vector<10x256xf32> to vector<10x256xbf16>
    %c0_1 = arith.constant 0 : index
    %c0_2 = arith.constant 0 : index
    %2 = vector.load %arg2[%c0_1, %c0_2] : memref<256x10xbf16, #tpu.memory_space<vmem>>, vector<256x10xbf16>
    %cst = arith.constant dense<0.000000e+00> : vector<256x256xf32>
    %3 = tpu.matmul %2, %1, %cst {dimension_numbers = #tpu.dot_dimension_numbers<[1], [0], [0], [1], [0, 0, 1, 1], [], []>} : vector<256x10xbf16>, vector<10x256xbf16>, vector<256x256xf32> -> vector<256x256xf32>
    %c0_3 = arith.constant 0 : index
    %c0_4 = arith.constant 0 : index
    %4 = vector.load %arg3[%c0_3, %c0_4] : memref<256x1xf32, #tpu.memory_space<vmem>>, vector<256x1xf32>
    %5 = vector.broadcast %4 : vector<256x1xf32> to vector<256x256xf32>
    %6 = arith.addf %3, %5 : vector<256x256xf32>
    %cst_5 = arith.constant 0.000000e+00 : f32
    %7 = vector.broadcast %cst_5 : f32 to vector<256x256xf32>
    %8 = arith.maximumf %6, %7 : vector<256x256xf32>
    %c0_6 = arith.constant 0 : index
    %c0_7 = arith.constant 0 : index
    %9 = vector.load %arg4[%c0_6, %c0_7] : memref<256x256xbf16, #tpu.memory_space<vmem>>, vector<256x256xbf16>
    %10 = arith.truncf %8 : vector<256x256xf32> to vector<256x256xbf16>
    %cst_8 = arith.constant dense<0.000000e+00> : vector<256x256xf32>
    %11 = tpu.matmul %9, %10, %cst_8 {dimension_numbers = #tpu.dot_dimension_numbers<[1], [0], [0], [1], [0, 0, 1, 1], [], []>} : vector<256x256xbf16>, vector<256x256xbf16>, vector<256x256xf32> -> vector<256x256xf32>
    %c0_9 = arith.constant 0 : index
    %c0_10 = arith.constant 0 : index
    %12 = vector.load %arg5[%c0_9, %c0_10] : memref<256x1xf32, #tpu.memory_space<vmem>>, vector<256x1xf32>
    %13 = vector.broadcast %12 : vector<256x1xf32> to vector<256x256xf32>
    %14 = arith.addf %11, %13 : vector<256x256xf32>
    %cst_11 = arith.constant 0.000000e+00 : f32
    %15 = vector.broadcast %cst_11 : f32 to vector<256x256xf32>
    %16 = arith.maximumf %14, %15 : vector<256x256xf32>
    %c0_12 = arith.constant 0 : index
    %c0_13 = arith.constant 0 : index
    %17 = vector.load %arg6[%c0_12, %c0_13] : memref<10x256xbf16, #tpu.memory_space<vmem>>, vector<10x256xbf16>
    %18 = arith.truncf %16 : vector<256x256xf32> to vector<256x256xbf16>
    %cst_14 = arith.constant dense<0.000000e+00> : vector<10x256xf32>
    %19 = tpu.matmul %17, %18, %cst_14 {dimension_numbers = #tpu.dot_dimension_numbers<[1], [0], [0], [1], [0, 0, 1, 1], [], []>} : vector<10x256xbf16>, vector<256x256xbf16>, vector<10x256xf32> -> vector<10x256xf32>
    %c0_15 = arith.constant 0 : index
    %c0_16 = arith.constant 0 : index
    %20 = vector.load %arg7[%c0_15, %c0_16] : memref<10x1xf32, #tpu.memory_space<vmem>>, vector<10x1xf32>
    %21 = vector.broadcast %20 : vector<10x1xf32> to vector<10x256xf32>
    %22 = arith.addf %19, %21 : vector<10x256xf32>
    %cst_17 = arith.constant 0.000000e+00 : f32
    %23 = vector.broadcast %cst_17 : f32 to vector<10x256xf32>
    %24 = arith.maximumf %22, %23 : vector<10x256xf32>
    %c0_18 = arith.constant 0 : index
    %c0_19 = arith.constant 0 : index
    %25 = vector.load %arg8[%c0_18, %c0_19] : memref<10x1xf32, #tpu.memory_space<vmem>>, vector<10x1xf32>
    %26 = vector.broadcast %25 : vector<10x1xf32> to vector<10x256xf32>
    %27 = arith.mulf %24, %26 : vector<10x256xf32>
    %cst_20 = arith.constant dense<0.000000e+00> : vector<256xf32>
    %28 = vector.multi_reduction <add>, %27, %cst_20 [0] : vector<10x256xf32> to vector<256xf32>
    %29 = vector.shape_cast %28 : vector<256xf32> to vector<1x256xf32>
    %c0_21 = arith.constant 0 : index
    %c0_22 = arith.constant 0 : index
    %30 = vector.load %arg9[%c0_21, %c0_22] : memref<1x1xf32, #tpu.memory_space<vmem>>, vector<1x1xf32>
    %31 = vector.broadcast %30 : vector<1x1xf32> to vector<1x256xf32>
    %32 = arith.addf %29, %31 : vector<1x256xf32>
    %c0_23 = arith.constant 0 : index
    %c0_24 = arith.constant 0 : index
    %33 = vector.load %arg10[%c0_23, %c0_24] : memref<1x256xf32, #tpu.memory_space<vmem>>, vector<1x256xf32>
    tpu.vector_store %arg10[%c0_23, %c0_24], %32 {strides = array<i32>} : memref<1x256xf32, #tpu.memory_space<vmem>>, vector<1x256xf32>,
    return
  }
  func.func @transform_0(%arg0: i32) -> (i32, i32) {
    %c0_i32 = arith.constant 0 : i32
    %c0_i32_0 = arith.constant 0 : i32
    return %c0_i32, %arg0 : i32, i32
  }
  func.func @transform_1(%arg0: i32) -> (i32, i32) {
    %c0_i32 = arith.constant 0 : i32
    %c0_i32_0 = arith.constant 0 : i32
    %c0_i32_1 = arith.constant 0 : i32
    return %c0_i32, %c0_i32_0 : i32, i32
  }
  func.func @transform_2(%arg0: i32) -> (i32, i32) {
    %c0_i32 = arith.constant 0 : i32
    %c0_i32_0 = arith.constant 0 : i32
    %c0_i32_1 = arith.constant 0 : i32
    return %c0_i32, %c0_i32_0 : i32, i32
  }
  func.func @transform_3(%arg0: i32) -> (i32, i32) {
    %c0_i32 = arith.constant 0 : i32
    %c0_i32_0 = arith.constant 0 : i32
    %c0_i32_1 = arith.constant 0 : i32
    return %c0_i32, %c0_i32_0 : i32, i32
  }
  func.func @transform_4(%arg0: i32) -> (i32, i32) {
    %c0_i32 = arith.constant 0 : i32
    %c0_i32_0 = arith.constant 0 : i32
    %c0_i32_1 = arith.constant 0 : i32
    return %c0_i32, %c0_i32_0 : i32, i32
  }
  func.func @transform_5(%arg0: i32) -> (i32, i32) {
    %c0_i32 = arith.constant 0 : i32
    %c0_i32_0 = arith.constant 0 : i32
    %c0_i32_1 = arith.constant 0 : i32
    return %c0_i32, %c0_i32_0 : i32, i32
  }
  func.func @transform_6(%arg0: i32) -> (i32, i32) {
    %c0_i32 = arith.constant 0 : i32
    %c0_i32_0 = arith.constant 0 : i32
    %c0_i32_1 = arith.constant 0 : i32
    return %c0_i32, %c0_i32_0 : i32, i32
  }
  func.func @transform_7(%arg0: i32) -> (i32, i32) {
    %c0_i32 = arith.constant 0 : i32
    %c0_i32_0 = arith.constant 0 : i32
    %c0_i32_1 = arith.constant 0 : i32
    return %c0_i32, %c0_i32_0 : i32, i32
  }
  func.func @transform_8(%arg0: i32) -> (i32, i32) {
    %c0_i32 = arith.constant 0 : i32
    %c0_i32_0 = arith.constant 0 : i32
    %c0_i32_1 = arith.constant 0 : i32
    return %c0_i32, %c0_i32_0 : i32, i32
  }
  func.func @transform_9(%arg0: i32) -> (i32, i32) {
    %c0_i32 = arith.constant 0 : i32
    %c0_i32_0 = arith.constant 0 : i32
    return %c0_i32, %arg0 : i32, i32
  }
}

</mosaic_0001>

<llo_original>
// kernel: _rob_predictor_call.1
$region0: #{_rob_predictor_call.1}
  #allocation0 [shape = 'u32[]', space=smem, size = 0x4, offset = 0x4, fixed_abs, tag = 'smem constant byte address 0x4 - core index']
  #allocation1 [shape = 'u32[144,128]{1,0:T(1,128)}', space=vmem, size = 0x12000, scoped, tag = 'internal scratch']
  #allocation2 [shape = 'f32[1,1]{1,0:T(1,128)S(1)}', space=vmem, size = 0x200, scoped, tag = 'scoped memory for _rob_predictor_call.1']
  %s0 = inlined_call_operand.vmem [shape: f32[10,256], index: 0, kind: input, shape index: {}]
  %s1 = inlined_call_operand.vmem [shape: bf16[256,10], index: 1, kind: input, shape index: {}]
  %s2 = inlined_call_operand.vmem [shape: f32[256,1], index: 2, kind: input, shape index: {}]
  %s3 = inlined_call_operand.vmem [shape: bf16[256,256], index: 3, kind: input, shape index: {}]
  %s4 = inlined_call_operand.vmem [shape: f32[256,1], index: 4, kind: input, shape index: {}]
  %s5 = inlined_call_operand.vmem [shape: bf16[10,256], index: 5, kind: input, shape index: {}]
  %s6 = inlined_call_operand.vmem [shape: f32[10,1], index: 6, kind: input, shape index: {}]
  %s7 = inlined_call_operand.vmem [shape: f32[10,1], index: 7, kind: input, shape index: {}]
  %s8 = inlined_call_operand.<no memory space> [shape: f32[1,1], index: 8, kind: input, shape index: {}]
  %s9 = inlined_call_operand.hbm [shape: f32[1,256], index: 9, kind: output, shape index: {}]
  %s10 = sld [smem:[#allocation0]]
  $region46: #{_rob_predictor_call.1} parent=0
    _
  %s12 = ssub.s32 1, %s10
  %s13 = scalar_select 0, %s12, %s10
  %v14 = vstv %s8
  %15 = vst [vmem:[#allocation2] sm:$0x1] %v14
  $region1: #{_rob_predictor_call.1} parent=0
    #allocation3 [shape = 'u8[1024]{0}', space=vmem, size = 0x400, scoped, tag = 'output window, operand 0, single buffered']
    #allocation4 [shape = 's32[1]{0}', space=sflag, size = 0x4, scoped, tag = 'scoped memory for _rob_predictor_call.1']
    %16 = vsyncpa [#allocation4], 0
    // Predicated region
    $region2: #{_rob_predictor_call.1} parent=1 // pred_check
      _
    $region3: #{_rob_predictor_call.1} parent=1 // pred_check_branch
      %18 = sbr.rel (0) target = $region5
    $region4: #{_rob_predictor_call.1} parent=1 // pred_region
      _
    $region5: #{_rob_predictor_call.1} parent=1 // pred_fallthru
      _
    // Predicated region
    $region6: #{_rob_predictor_call.1} parent=1 // pred_check
      _
    $region7: #{_rob_predictor_call.1} parent=1 // pred_check_branch
      %20 = sbr.rel (0) target = $region9
    $region8: #{_rob_predictor_call.1} parent=1 // pred_region
      _
    $region9: #{_rob_predictor_call.1} parent=1 // pred_fallthru
      _
    // Predicated region
    $region10: #{_rob_predictor_call.1} parent=1 // pred_check
      _
    $region11: #{_rob_predictor_call.1} parent=1 // pred_check_branch
      %22 = sbr.rel (0) target = $region13
    $region12: #{_rob_predictor_call.1} parent=1 // pred_region
      _
    $region13: #{_rob_predictor_call.1} parent=1 // pred_fallthru
      _
    // Predicated region
    $region14: #{_rob_predictor_call.1} parent=1 // pred_check
      _
    $region15: #{_rob_predictor_call.1} parent=1 // pred_check_branch
      %24 = sbr.rel (0) target = $region17
    $region16: #{_rob_predictor_call.1} parent=1 // pred_region
      _
    $region17: #{_rob_predictor_call.1} parent=1 // pred_fallthru
      _
    // Predicated region
    $region18: #{_rob_predictor_call.1} parent=1 // pred_check
      _
    $region19: #{_rob_predictor_call.1} parent=1 // pred_check_branch
      %26 = sbr.rel (0) target = $region21
    $region20: #{_rob_predictor_call.1} parent=1 // pred_region
      _
    $region21: #{_rob_predictor_call.1} parent=1 // pred_fallthru
      _
    // Predicated region
    $region22: #{_rob_predictor_call.1} parent=1 // pred_check
      _
    $region23: #{_rob_predictor_call.1} parent=1 // pred_check_branch
      %28 = sbr.rel (0) target = $region25
    $region24: #{_rob_predictor_call.1} parent=1 // pred_region
      _
    $region25: #{_rob_predictor_call.1} parent=1 // pred_fallthru
      _
    // Predicated region
    $region26: #{_rob_predictor_call.1} parent=1 // pred_check
      _
    $region27: #{_rob_predictor_call.1} parent=1 // pred_check_branch
      %30 = sbr.rel (0) target = $region29
    $region28: #{_rob_predictor_call.1} parent=1 // pred_region
      _
    $region29: #{_rob_predictor_call.1} parent=1 // pred_fallthru
      _
    // Predicated region
    $region30: #{_rob_predictor_call.1} parent=1 // pred_check
      _
    $region31: #{_rob_predictor_call.1} parent=1 // pred_check_branch
      %32 = sbr.rel (0) target = $region33
    $region32: #{_rob_predictor_call.1} parent=1 // pred_region
      _
    $region33: #{_rob_predictor_call.1} parent=1 // pred_fallthru
      _
    // Predicated region
    $region34: #{_rob_predictor_call.1} parent=1 // pred_check
      _
    $region35: #{_rob_predictor_call.1} parent=1 // pred_check_branch
      %34 = sbr.rel (0) target = $region37
    $region36: #{_rob_predictor_call.1} parent=1 // pred_region
      _
    $region37: #{_rob_predictor_call.1} parent=1 // pred_fallthru
      _
    %v36 = vld [vmem:[%s0] sm:$0xff]
    %v37 = vld [vmem:[%s0 + $0x8] sm:$0xff]
    %v38 = vld [vmem:[%s0 + $0x10] sm:$0x3]
    %v39 = vld [vmem:[%s0 + $0x18] sm:$0x3]
    %v40 = vpack.c.bf16 %v38, %v36
    %v41 = vpack.c.bf16 %v39, %v37
    %v42 = vld [vmem:[%s1] sm:$0xf]
    %v43 = vld [vmem:[%s1 + $0x4] sm:$0xf]
    %v44 = vld [vmem:[%s1 + $0x8] sm:$0xf]
    %v45 = vld [vmem:[%s1 + $0xc] sm:$0xf]
    %v46 = vld [vmem:[%s1 + $0x10] sm:$0xf]
    %v47 = vld [vmem:[%s1 + $0x14] sm:$0xf]
    %v48 = vld [vmem:[%s1 + $0x18] sm:$0xf]
    %v49 = vld [vmem:[%s1 + $0x1c] sm:$0xf]
    %v50 = vld [vmem:[%s1 + $0x20] sm:$0xf]
    %v51 = vld [vmem:[%s1 + $0x24] sm:$0xf]
    %v52 = vld [vmem:[%s1 + $0x28] sm:$0xf]
    %v53 = vld [vmem:[%s1 + $0x2c] sm:$0xf]
    %v54 = vld [vmem:[%s1 + $0x30] sm:$0xf]
    %v55 = vld [vmem:[%s1 + $0x34] sm:$0xf]
    %v56 = vld [vmem:[%s1 + $0x38] sm:$0xf]
    %v57 = vld [vmem:[%s1 + $0x3c] sm:$0xf]
    %v58 = vld [vmem:[%s1 + $0x40] sm:$0xf]
    %v59 = vld [vmem:[%s1 + $0x44] sm:$0xf]
    %v60 = vld [vmem:[%s1 + $0x48] sm:$0xf]
    %v61 = vld [vmem:[%s1 + $0x4c] sm:$0xf]
    %v62 = vld [vmem:[%s1 + $0x50] sm:$0xf]
    %v63 = vld [vmem:[%s1 + $0x54] sm:$0xf]
    %v64 = vld [vmem:[%s1 + $0x58] sm:$0xf]
    %v65 = vld [vmem:[%s1 + $0x5c] sm:$0xf]
    %v66 = vld [vmem:[%s1 + $0x60] sm:$0xf]
    %v67 = vld [vmem:[%s1 + $0x64] sm:$0xf]
    %v68 = vld [vmem:[%s1 + $0x68] sm:$0xf]
    %v69 = vld [vmem:[%s1 + $0x6c] sm:$0xf]
    %v70 = vld [vmem:[%s1 + $0x70] sm:$0xf]
    %v71 = vld [vmem:[%s1 + $0x74] sm:$0xf]
    %v72 = vld [vmem:[%s1 + $0x78] sm:$0xf]
    %v73 = vld [vmem:[%s1 + $0x7c] sm:$0xf]
    %v74 = vld [vmem:[%s2] sm:$0xff]
    %v75 = vld [vmem:[%s2 + $0x8] sm:$0xff]
    %v76 = vld [vmem:[%s2 + $0x10] sm:$0xff]
    %v77 = vld [vmem:[%s2 + $0x18] sm:$0xff]
    %v78 = vld [vmem:[%s2 + $0x20] sm:$0xff]
    %v79 = vld [vmem:[%s2 + $0x28] sm:$0xff]
    %v80 = vld [vmem:[%s2 + $0x30] sm:$0xff]
    %v81 = vld [vmem:[%s2 + $0x38] sm:$0xff]
    %v82 = vld [vmem:[%s2 + $0x40] sm:$0xff]
    %v83 = vld [vmem:[%s2 + $0x48] sm:$0xff]
    %v84 = vld [vmem:[%s2 + $0x50] sm:$0xff]
    %v85 = vld [vmem:[%s2 + $0x58] sm:$0xff]
    %v86 = vld [vmem:[%s2 + $0x60] sm:$0xff]
    %v87 = vld [vmem:[%s2 + $0x68] sm:$0xff]
    %v88 = vld [vmem:[%s2 + $0x70] sm:$0xff]
    %v89 = vld [vmem:[%s2 + $0x78] sm:$0xff]
    %v90 = vld [vmem:[%s2 + $0x80] sm:$0xff]
    %v91 = vld [vmem:[%s2 + $0x88] sm:$0xff]
    %v92 = vld [vmem:[%s2 + $0x90] sm:$0xff]
    %v93 = vld [vmem:[%s2 + $0x98] sm:$0xff]
    %v94 = vld [vmem:[%s2 + $0xa0] sm:$0xff]
    %v95 = vld [vmem:[%s2 + $0xa8] sm:$0xff]
    %v96 = vld [vmem:[%s2 + $0xb0] sm:$0xff]
    %v97 = vld [vmem:[%s2 + $0xb8] sm:$0xff]
    %v98 = vld [vmem:[%s2 + $0xc0] sm:$0xff]
    %v99 = vld [vmem:[%s2 + $0xc8] sm:$0xff]
    %v100 = vld [vmem:[%s2 + $0xd0] sm:$0xff]
    %v101 = vld [vmem:[%s2 + $0xd8] sm:$0xff]
    %v102 = vld [vmem:[%s2 + $0xe0] sm:$0xff]
    %v103 = vld [vmem:[%s2 + $0xe8] sm:$0xff]
    %v104 = vld [vmem:[%s2 + $0xf0] sm:$0xff]
    %v105 = vld [vmem:[%s2 + $0xf8] sm:$0xff]
    %107 = vset.pattern.permute.xlu0 0
    %108 = vperm.xlu0 %107, %v74
    %v109 = vpop.permute.xlu0 %108
    %112 = vset.pattern.permute.xlu0 0
    %113 = vperm.xlu0 %112, %v75
    %v114 = vpop.permute.xlu0 %113
    %117 = vset.pattern.permute.xlu0 0
    %118 = vperm.xlu0 %117, %v76
    %v119 = vpop.permute.xlu0 %118
    %122 = vset.pattern.permute.xlu0 0
    %123 = vperm.xlu0 %122, %v77
    %v124 = vpop.permute.xlu0 %123
    %127 = vset.pattern.permute.xlu0 0
    %128 = vperm.xlu0 %127, %v78
    %v129 = vpop.permute.xlu0 %128
    %132 = vset.pattern.permute.xlu0 0
    %133 = vperm.xlu0 %132, %v79
    %v134 = vpop.permute.xlu0 %133
    %137 = vset.pattern.permute.xlu0 0
    %138 = vperm.xlu0 %137, %v80
    %v139 = vpop.permute.xlu0 %138
    %142 = vset.pattern.permute.xlu0 0
    %143 = vperm.xlu0 %142, %v81
    %v144 = vpop.permute.xlu0 %143
    %147 = vset.pattern.permute.xlu0 0
    %148 = vperm.xlu0 %147, %v82
    %v149 = vpop.permute.xlu0 %148
    %152 = vset.pattern.permute.xlu0 0
    %153 = vperm.xlu0 %152, %v83
    %v154 = vpop.permute.xlu0 %153
    %157 = vset.pattern.permute.xlu0 0
    %158 = vperm.xlu0 %157, %v84
    %v159 = vpop.permute.xlu0 %158
    %162 = vset.pattern.permute.xlu0 0
    %163 = vperm.xlu0 %162, %v85
    %v164 = vpop.permute.xlu0 %163
    %167 = vset.pattern.permute.xlu0 0
    %168 = vperm.xlu0 %167, %v86
    %v169 = vpop.permute.xlu0 %168
    %172 = vset.pattern.permute.xlu0 0
    %173 = vperm.xlu0 %172, %v87
    %v174 = vpop.permute.xlu0 %173
    %177 = vset.pattern.permute.xlu0 0
    %178 = vperm.xlu0 %177, %v88
    %v179 = vpop.permute.xlu0 %178
    %182 = vset.pattern.permute.xlu0 0
    %183 = vperm.xlu0 %182, %v89
    %v184 = vpop.permute.xlu0 %183
    %187 = vset.pattern.permute.xlu0 0
    %188 = vperm.xlu0 %187, %v90
    %v189 = vpop.permute.xlu0 %188
    %192 = vset.pattern.permute.xlu0 0
    %193 = vperm.xlu0 %192, %v91
    %v194 = vpop.permute.xlu0 %193
    %197 = vset.pattern.permute.xlu0 0
    %198 = vperm.xlu0 %197, %v92
    %v199 = vpop.permute.xlu0 %198
    %202 = vset.pattern.permute.xlu0 0
    %203 = vperm.xlu0 %202, %v93
    %v204 = vpop.permute.xlu0 %203
    %207 = vset.pattern.permute.xlu0 0
    %208 = vperm.xlu0 %207, %v94
    %v209 = vpop.permute.xlu0 %208
    %212 = vset.pattern.permute.xlu0 0
    %213 = vperm.xlu0 %212, %v95
    %v214 = vpop.permute.xlu0 %213
    %217 = vset.pattern.permute.xlu0 0
    %218 = vperm.xlu0 %217, %v96
    %v219 = vpop.permute.xlu0 %218
    %222 = vset.pattern.permute.xlu0 0
    %223 = vperm.xlu0 %222, %v97
    %v224 = vpop.permute.xlu0 %223
    %227 = vset.pattern.permute.xlu0 0
    %228 = vperm.xlu0 %227, %v98
    %v229 = vpop.permute.xlu0 %228
    %232 = vset.pattern.permute.xlu0 0
    %233 = vperm.xlu0 %232, %v99
    %v234 = vpop.permute.xlu0 %233
    %237 = vset.pattern.permute.xlu0 0
    %238 = vperm.xlu0 %237, %v100
    %v239 = vpop.permute.xlu0 %238
    %242 = vset.pattern.permute.xlu0 0
    %243 = vperm.xlu0 %242, %v101
    %v244 = vpop.permute.xlu0 %243
    %247 = vset.pattern.permute.xlu0 0
    %248 = vperm.xlu0 %247, %v102
    %v249 = vpop.permute.xlu0 %248
    %252 = vset.pattern.permute.xlu0 0
    %253 = vperm.xlu0 %252, %v103
    %v254 = vpop.permute.xlu0 %253
    %257 = vset.pattern.permute.xlu0 0
    %258 = vperm.xlu0 %257, %v104
    %v259 = vpop.permute.xlu0 %258
    %262 = vset.pattern.permute.xlu0 0
    %263 = vperm.xlu0 %262, %v105
    %v264 = vpop.permute.xlu0 %263
    %v298 = vunpack.c.l.b16 %v42
    %v299 = vunpack.c.l.b16 %v43
    %v300 = vunpack.c.l.b16 %v44
    %v301 = vunpack.c.l.b16 %v45
    %v302 = vunpack.c.l.b16 %v46
    %v303 = vunpack.c.l.b16 %v47
    %v304 = vunpack.c.l.b16 %v48
    %v305 = vunpack.c.l.b16 %v49
    %v306 = vunpack.c.l.b16 %v50
    %v307 = vunpack.c.l.b16 %v51
    %v308 = vunpack.c.l.b16 %v52
    %v309 = vunpack.c.l.b16 %v53
    %v310 = vunpack.c.l.b16 %v54
    %v311 = vunpack.c.l.b16 %v55
    %v312 = vunpack.c.l.b16 %v56
    %v313 = vunpack.c.l.b16 %v57
    %v314 = vunpack.c.l.b16 %v58
    %v315 = vunpack.c.l.b16 %v59
    %v316 = vunpack.c.l.b16 %v60
    %v317 = vunpack.c.l.b16 %v61
    %v318 = vunpack.c.l.b16 %v62
    %v319 = vunpack.c.l.b16 %v63
    %v320 = vunpack.c.l.b16 %v64
    %v321 = vunpack.c.l.b16 %v65
    %v322 = vunpack.c.l.b16 %v66
    %v323 = vunpack.c.l.b16 %v67
    %v324 = vunpack.c.l.b16 %v68
    %v325 = vunpack.c.l.b16 %v69
    %v326 = vunpack.c.l.b16 %v70
    %v327 = vunpack.c.l.b16 %v71
    %v328 = vunpack.c.l.b16 %v72
    %v329 = vunpack.c.l.b16 %v73
    %v330 = vpack.c.b16 %v299, %v298
    %v331 = vpack.c.b16 %v301, %v300
    %v332 = vpack.c.b16 %v303, %v302
    %v333 = vpack.c.b16 %v305, %v304
    %v334 = vpack.c.b16 %v307, %v306
    %v335 = vpack.c.b16 %v309, %v308
    %v336 = vpack.c.b16 %v311, %v310
    %v337 = vpack.c.b16 %v313, %v312
    %v338 = vpack.c.b16 %v315, %v314
    %v339 = vpack.c.b16 %v317, %v316
    %v340 = vpack.c.b16 %v319, %v318
    %v341 = vpack.c.b16 %v321, %v320
    %v342 = vpack.c.b16 %v323, %v322
    %v343 = vpack.c.b16 %v325, %v324
    %v344 = vpack.c.b16 %v327, %v326
    %v345 = vpack.c.b16 %v329, %v328
    %vm346 = vcmask 80896
    %v348 = vsel %vm346, %v330, 0
    %v351 = vsel %vm346, %v331, 0
    %v354 = vsel %vm346, %v332, 0
    %v357 = vsel %vm346, %v333, 0
    %v360 = vsel %vm346, %v334, 0
    %v363 = vsel %vm346, %v335, 0
    %v366 = vsel %vm346, %v336, 0
    %v369 = vsel %vm346, %v337, 0
    %v372 = vsel %vm346, %v338, 0
    %v375 = vsel %vm346, %v339, 0
    %v378 = vsel %vm346, %v340, 0
    %v381 = vsel %vm346, %v341, 0
    %v384 = vsel %vm346, %v342, 0
    %v387 = vsel %vm346, %v343, 0
    %v390 = vsel %vm346, %v344, 0
    %v393 = vsel %vm346, %v345, 0
    %vm395 = vcmask 1044480
    %v397 = vsel %vm395, %v40, 0
    %v400 = vsel %vm395, %v41, 0
    %402 = vmatprep.subr.bf16.mxu0 %v400
    %403 = vmatpush1.bf16.msra.mxu0 %v397
    %404 = vmatprep.subr.bf16.mxu0 0
    %405 = vmatpush1.bf16.msra.mxu0 0
    %406 = vmatprep.subr.bf16.mxu0 0
    %407 = vmatpush1.bf16.msra.mxu0 0
    %408 = vmatprep.subr.bf16.mxu0 0
    %409 = vmatpush1.bf16.msra.mxu0 0
    %410 = vmatprep.subr.bf16.mxu0 0
    %411 = vmatpush1.bf16.msra.mxu0 0
    %412 = vmatprep.subr.bf16.mxu0 0
    %413 = vmatpush1.bf16.msra.mxu0 0
    %414 = vmatprep.subr.bf16.mxu0 0
    %415 = vmatpush1.bf16.msra.mxu0 0
    %416 = vmatprep.subr.bf16.mxu0 0
    %417 = vmatpush1.bf16.msra.mxu0 0
    %418 = vmatprep.subr.bf16.mxu0 0
    %419 = vmatpush1.bf16.msra.mxu0 0
    %420 = vmatprep.subr.bf16.mxu0 0
    %421 = vmatpush1.bf16.msra.mxu0 0
    %422 = vmatprep.subr.bf16.mxu0 0
    %423 = vmatpush1.bf16.msra.mxu0 0
    %424 = vmatprep.subr.bf16.mxu0 0
    %425 = vmatpush1.bf16.msra.mxu0 0
    %426 = vmatprep.subr.bf16.mxu0 0
    %427 = vmatpush1.bf16.msra.mxu0 0
    %428 = vmatprep.subr.bf16.mxu0 0
    %429 = vmatpush1.bf16.msra.mxu0 0
    %430 = vmatprep.subr.bf16.mxu0 0
    %431 = vmatpush1.bf16.msra.mxu0 0
    %432 = vmatprep.subr.bf16.mxu0 0
    %433 = vmatpush1.bf16.msra.mxu0 0
    %434 = vmatprep.mubr.bf16.mxu0 0
    %435 = vmatmul.mubr.bf16.gmra.mrb[0].mxu0 %v348
    %v436 = vpop.f32.mrb[0].mxu0
    %v437 = vadd.f32 %v109, %v436
    %v438 = vpop.f32.mrb[0].mxu0
    %v439 = vadd.f32 %v109, %v438
    %v440 = vpop.f32.mrb[0].mxu0
    %v441 = vadd.f32 %v114, %v440
    %v442 = vpop.f32.mrb[0].mxu0
    %v443 = vadd.f32 %v114, %v442
    %444 = vmatprep.mubr.bf16.mxu0 0
    %445 = vmatmul.mubr.bf16.gmra.mrb[0].mxu0 %v351
    %v446 = vpop.f32.mrb[0].mxu0
    %v447 = vadd.f32 %v119, %v446
    %v448 = vpop.f32.mrb[0].mxu0
    %v449 = vadd.f32 %v119, %v448
    %v450 = vpop.f32.mrb[0].mxu0
    %v451 = vadd.f32 %v124, %v450
    %v452 = vpop.f32.mrb[0].mxu0
    %v453 = vadd.f32 %v124, %v452
    %454 = vmatprep.mubr.bf16.mxu0 0
    %455 = vmatmul.mubr.bf16.gmra.mrb[0].mxu0 %v354
    %v456 = vpop.f32.mrb[0].mxu0
    %v457 = vadd.f32 %v129, %v456
    %v458 = vpop.f32.mrb[0].mxu0
    %v459 = vadd.f32 %v129, %v458
    %v460 = vpop.f32.mrb[0].mxu0
    %v461 = vadd.f32 %v134, %v460
    %v462 = vpop.f32.mrb[0].mxu0
    %v463 = vadd.f32 %v134, %v462
    %464 = vmatprep.mubr.bf16.mxu0 0
    %465 = vmatmul.mubr.bf16.gmra.mrb[0].mxu0 %v357
    %v466 = vpop.f32.mrb[0].mxu0
    %v467 = vadd.f32 %v139, %v466
    %v468 = vpop.f32.mrb[0].mxu0
    %v469 = vadd.f32 %v139, %v468
    %v470 = vpop.f32.mrb[0].mxu0
    %v471 = vadd.f32 %v144, %v470
    %v472 = vpop.f32.mrb[0].mxu0
    %v473 = vadd.f32 %v144, %v472
    %474 = vmatprep.mubr.bf16.mxu0 0
    %475 = vmatmul.mubr.bf16.gmra.mrb[0].mxu0 %v360
    %v476 = vpop.f32.mrb[0].mxu0
    %v477 = vadd.f32 %v149, %v476
    %v478 = vpop.f32.mrb[0].mxu0
    %v479 = vadd.f32 %v149, %v478
    %v480 = vpop.f32.mrb[0].mxu0
    %v481 = vadd.f32 %v154, %v480
    %v482 = vpop.f32.mrb[0].mxu0
    %v483 = vadd.f32 %v154, %v482
    %484 = vmatprep.mubr.bf16.mxu0 0
    %485 = vmatmul.mubr.bf16.gmra.mrb[0].mxu0 %v363
    %v486 = vpop.f32.mrb[0].mxu0
    %v487 = vadd.f32 %v159, %v486
    %v488 = vpop.f32.mrb[0].mxu0
    %v489 = vadd.f32 %v159, %v488
    %v490 = vpop.f32.mrb[0].mxu0
    %v491 = vadd.f32 %v164, %v490
    %v492 = vpop.f32.mrb[0].mxu0
    %v493 = vadd.f32 %v164, %v492
    %494 = vmatprep.mubr.bf16.mxu0 0
    %495 = vmatmul.mubr.bf16.gmra.mrb[0].mxu0 %v366
    %v496 = vpop.f32.mrb[0].mxu0
    %v497 = vadd.f32 %v169, %v496
    %v498 = vpop.f32.mrb[0].mxu0
    %v499 = vadd.f32 %v169, %v498
    %v500 = vpop.f32.mrb[0].mxu0
    %v501 = vadd.f32 %v174, %v500
    %v502 = vpop.f32.mrb[0].mxu0
    %v503 = vadd.f32 %v174, %v502
    %504 = vmatprep.mubr.bf16.mxu0 0
    %505 = vmatmul.mubr.bf16.gmra.mrb[0].mxu0 %v369
    %v506 = vpop.f32.mrb[0].mxu0
    %v507 = vadd.f32 %v179, %v506
    %v508 = vpop.f32.mrb[0].mxu0
    %v509 = vadd.f32 %v179, %v508
    %v510 = vpop.f32.mrb[0].mxu0
    %v511 = vadd.f32 %v184, %v510
    %v512 = vpop.f32.mrb[0].mxu0
    %v513 = vadd.f32 %v184, %v512
    %514 = vmatprep.mubr.bf16.mxu0 0
    %515 = vmatmul.mubr.bf16.gmra.mrb[0].mxu0 %v372
    %v516 = vpop.f32.mrb[0].mxu0
    %v517 = vadd.f32 %v189, %v516
    %v518 = vpop.f32.mrb[0].mxu0
    %v519 = vadd.f32 %v189, %v518
    %v520 = vpop.f32.mrb[0].mxu0
    %v521 = vadd.f32 %v194, %v520
    %v522 = vpop.f32.mrb[0].mxu0
    %v523 = vadd.f32 %v194, %v522
    %524 = vmatprep.mubr.bf16.mxu0 0
    %525 = vmatmul.mubr.bf16.gmra.mrb[0].mxu0 %v375
    %v526 = vpop.f32.mrb[0].mxu0
    %v527 = vadd.f32 %v199, %v526
    %v528 = vpop.f32.mrb[0].mxu0
    %v529 = vadd.f32 %v199, %v528
    %v530 = vpop.f32.mrb[0].mxu0
    %v531 = vadd.f32 %v204, %v530
    %v532 = vpop.f32.mrb[0].mxu0
    %v533 = vadd.f32 %v204, %v532
    %534 = vmatprep.mubr.bf16.mxu0 0
    %535 = vmatmul.mubr.bf16.gmra.mrb[0].mxu0 %v378
    %v536 = vpop.f32.mrb[0].mxu0
    %v537 = vadd.f32 %v209, %v536
    %v538 = vpop.f32.mrb[0].mxu0
    %v539 = vadd.f32 %v209, %v538
    %v540 = vpop.f32.mrb[0].mxu0
    %v541 = vadd.f32 %v214, %v540
    %v542 = vpop.f32.mrb[0].mxu0
    %v543 = vadd.f32 %v214, %v542
    %544 = vmatprep.mubr.bf16.mxu0 0
    %545 = vmatmul.mubr.bf16.gmra.mrb[0].mxu0 %v381
    %v546 = vpop.f32.mrb[0].mxu0
    %v547 = vadd.f32 %v219, %v546
    %v548 = vpop.f32.mrb[0].mxu0
    %v549 = vadd.f32 %v219, %v548
    %v550 = vpop.f32.mrb[0].mxu0
    %v551 = vadd.f32 %v224, %v550
    %v552 = vpop.f32.mrb[0].mxu0
    %v553 = vadd.f32 %v224, %v552
    %554 = vmatprep.mubr.bf16.mxu0 0
    %555 = vmatmul.mubr.bf16.gmra.mrb[0].mxu0 %v384
    %v556 = vpop.f32.mrb[0].mxu0
    %v557 = vadd.f32 %v229, %v556
    %v558 = vpop.f32.mrb[0].mxu0
    %v559 = vadd.f32 %v229, %v558
    %v560 = vpop.f32.mrb[0].mxu0
    %v561 = vadd.f32 %v234, %v560
    %v562 = vpop.f32.mrb[0].mxu0
    %v563 = vadd.f32 %v234, %v562
    %564 = vmatprep.mubr.bf16.mxu0 0
    %565 = vmatmul.mubr.bf16.gmra.mrb[0].mxu0 %v387
    %v566 = vpop.f32.mrb[0].mxu0
    %v567 = vadd.f32 %v239, %v566
    %v568 = vpop.f32.mrb[0].mxu0
    %v569 = vadd.f32 %v239, %v568
    %v570 = vpop.f32.mrb[0].mxu0
    %v571 = vadd.f32 %v244, %v570
    %v572 = vpop.f32.mrb[0].mxu0
    %v573 = vadd.f32 %v244, %v572
    %574 = vmatprep.mubr.bf16.mxu0 0
    %575 = vmatmul.mubr.bf16.gmra.mrb[0].mxu0 %v390
    %v576 = vpop.f32.mrb[0].mxu0
    %v577 = vadd.f32 %v249, %v576
    %v578 = vpop.f32.mrb[0].mxu0
    %v579 = vadd.f32 %v249, %v578
    %v580 = vpop.f32.mrb[0].mxu0
    %v581 = vadd.f32 %v254, %v580
    %v582 = vpop.f32.mrb[0].mxu0
    %v583 = vadd.f32 %v254, %v582
    %584 = vmatprep.mubr.bf16.mxu0 0
    %585 = vmatmul.mubr.bf16.gmra.mrb[0].mxu0 %v393
    %v586 = vpop.f32.mrb[0].mxu0
    %v587 = vadd.f32 %v259, %v586
    %v588 = vpop.f32.mrb[0].mxu0
    %v589 = vadd.f32 %v259, %v588
    %v590 = vpop.f32.mrb[0].mxu0
    %v591 = vadd.f32 %v264, %v590
    %v592 = vpop.f32.mrb[0].mxu0
    %v593 = vadd.f32 %v264, %v592
    %594 = vdwg.mxu0
    %v595 = vmax.f32 %v437, 0.0
    %v596 = vmax.f32 %v439, 0.0
    %v597 = vmax.f32 %v441, 0.0
    %v598 = vmax.f32 %v443, 0.0
    %v599 = vmax.f32 %v447, 0.0
    %v600 = vmax.f32 %v449, 0.0
    %v601 = vmax.f32 %v451, 0.0
    %v602 = vmax.f32 %v453, 0.0
    %v603 = vmax.f32 %v457, 0.0
    %v604 = vmax.f32 %v459, 0.0
    %v605 = vmax.f32 %v461, 0.0
    %v606 = vmax.f32 %v463, 0.0
    %v607 = vmax.f32 %v467, 0.0
    %v608 = vmax.f32 %v469, 0.0
    %v609 = vmax.f32 %v471, 0.0
    %v610 = vmax.f32 %v473, 0.0
    %v611 = vmax.f32 %v477, 0.0
    %v612 = vmax.f32 %v479, 0.0
    %v613 = vmax.f32 %v481, 0.0
    %v614 = vmax.f32 %v483, 0.0
    %v615 = vmax.f32 %v487, 0.0
    %v616 = vmax.f32 %v489, 0.0
    %v617 = vmax.f32 %v491, 0.0
    %v618 = vmax.f32 %v493, 0.0
    %v619 = vmax.f32 %v497, 0.0
    %v620 = vmax.f32 %v499, 0.0
    %v621 = vmax.f32 %v501, 0.0
    %v622 = vmax.f32 %v503, 0.0
    %v623 = vmax.f32 %v507, 0.0
    %v624 = vmax.f32 %v509, 0.0
    %v625 = vmax.f32 %v511, 0.0
    %v626 = vmax.f32 %v513, 0.0
    %v627 = vmax.f32 %v517, 0.0
    %v628 = vmax.f32 %v519, 0.0
    %v629 = vmax.f32 %v521, 0.0
    %v630 = vmax.f32 %v523, 0.0
    %v631 = vmax.f32 %v527, 0.0
    %v632 = vmax.f32 %v529, 0.0
    %v633 = vmax.f32 %v531, 0.0
    %v634 = vmax.f32 %v533, 0.0
    %v635 = vmax.f32 %v537, 0.0
    %v636 = vmax.f32 %v539, 0.0
    %v637 = vmax.f32 %v541, 0.0
    %v638 = vmax.f32 %v543, 0.0
    %v639 = vmax.f32 %v547, 0.0
    %v640 = vmax.f32 %v549, 0.0
    %v641 = vmax.f32 %v551, 0.0
    %v642 = vmax.f32 %v553, 0.0
    %v643 = vmax.f32 %v557, 0.0
    %v644 = vmax.f32 %v559, 0.0
    %v645 = vmax.f32 %v561, 0.0
    %v646 = vmax.f32 %v563, 0.0
    %v647 = vmax.f32 %v567, 0.0
    %v648 = vmax.f32 %v569, 0.0
    %v649 = vmax.f32 %v571, 0.0
    %v650 = vmax.f32 %v573, 0.0
    %v651 = vmax.f32 %v577, 0.0
    %v652 = vmax.f32 %v579, 0.0
    %v653 = vmax.f32 %v581, 0.0
    %v654 = vmax.f32 %v583, 0.0
    %v655 = vmax.f32 %v587, 0.0
    %v656 = vmax.f32 %v589, 0.0
    %v657 = vmax.f32 %v591, 0.0
    %v658 = vmax.f32 %v593, 0.0
    %v659 = vld [vmem:[%s3] sm:$0xff]
    %v660 = vld [vmem:[%s3 + $0x8] sm:$0xff]
    %v661 = vld [vmem:[%s3 + $0x10] sm:$0xff]
    %v662 = vld [vmem:[%s3 + $0x18] sm:$0xff]
    %v663 = vld [vmem:[%s3 + $0x20] sm:$0xff]
    %v664 = vld [vmem:[%s3 + $0x28] sm:$0xff]
    %v665 = vld [vmem:[%s3 + $0x30] sm:$0xff]
    %v666 = vld [vmem:[%s3 + $0x38] sm:$0xff]
    %v667 = vld [vmem:[%s3 + $0x40] sm:$0xff]
    %v668 = vld [vmem:[%s3 + $0x48] sm:$0xff]
    %v669 = vld [vmem:[%s3 + $0x50] sm:$0xff]
    %v670 = vld [vmem:[%s3 + $0x58] sm:$0xff]
    %v671 = vld [vmem:[%s3 + $0x60] sm:$0xff]
    %v672 = vld [vmem:[%s3 + $0x68] sm:$0xff]
    %v673 = vld [vmem:[%s3 + $0x70] sm:$0xff]
    %v674 = vld [vmem:[%s3 + $0x78] sm:$0xff]
    %v675 = vld [vmem:[%s3 + $0x80] sm:$0xff]
    %v676 = vld [vmem:[%s3 + $0x88] sm:$0xff]
    %v677 = vld [vmem:[%s3 + $0x90] sm:$0xff]
    %v678 = vld [vmem:[%s3 + $0x98] sm:$0xff]
    %v679 = vld [vmem:[%s3 + $0xa0] sm:$0xff]
    %v680 = vld [vmem:[%s3 + $0xa8] sm:$0xff]
    %v681 = vld [vmem:[%s3 + $0xb0] sm:$0xff]
    %v682 = vld [vmem:[%s3 + $0xb8] sm:$0xff]
    %v683 = vld [vmem:[%s3 + $0xc0] sm:$0xff]
    %v684 = vld [vmem:[%s3 + $0xc8] sm:$0xff]
    %v685 = vld [vmem:[%s3 + $0xd0] sm:$0xff]
    %v686 = vld [vmem:[%s3 + $0xd8] sm:$0xff]
    %v687 = vld [vmem:[%s3 + $0xe0] sm:$0xff]
    %v688 = vld [vmem:[%s3 + $0xe8] sm:$0xff]
    %v689 = vld [vmem:[%s3 + $0xf0] sm:$0xff]
    %v690 = vld [vmem:[%s3 + $0xf8] sm:$0xff]
    %v691 = vpack.c.bf16 %v597, %v595
    %v692 = vpack.c.bf16 %v598, %v596
    %v693 = vpack.c.bf16 %v601, %v599
    %v694 = vpack.c.bf16 %v602, %v600
    %v695 = vpack.c.bf16 %v605, %v603
    %v696 = vpack.c.bf16 %v606, %v604
    %v697 = vpack.c.bf16 %v609, %v607
    %v698 = vpack.c.bf16 %v610, %v608
    %v699 = vpack.c.bf16 %v613, %v611
    %v700 = vpack.c.bf16 %v614, %v612
    %v701 = vpack.c.bf16 %v617, %v615
    %v702 = vpack.c.bf16 %v618, %v616
    %v703 = vpack.c.bf16 %v621, %v619
    %v704 = vpack.c.bf16 %v622, %v620
    %v705 = vpack.c.bf16 %v625, %v623
    %v706 = vpack.c.bf16 %v626, %v624
    %v707 = vpack.c.bf16 %v629, %v627
    %v708 = vpack.c.bf16 %v630, %v628
    %v709 = vpack.c.bf16 %v633, %v631
    %v710 = vpack.c.bf16 %v634, %v632
    %v711 = vpack.c.bf16 %v637, %v635
    %v712 = vpack.c.bf16 %v638, %v636
    %v713 = vpack.c.bf16 %v641, %v639
    %v714 = vpack.c.bf16 %v642, %v640
    %v715 = vpack.c.bf16 %v645, %v643
    %v716 = vpack.c.bf16 %v646, %v644
    %v717 = vpack.c.bf16 %v649, %v647
    %v718 = vpack.c.bf16 %v650, %v648
    %v719 = vpack.c.bf16 %v653, %v651
    %v720 = vpack.c.bf16 %v654, %v652
    %v721 = vpack.c.bf16 %v657, %v655
    %v722 = vpack.c.bf16 %v658, %v656
    %v723 = vld [vmem:[%s4] sm:$0xff]
    %v724 = vld [vmem:[%s4 + $0x8] sm:$0xff]
    %v725 = vld [vmem:[%s4 + $0x10] sm:$0xff]
    %v726 = vld [vmem:[%s4 + $0x18] sm:$0xff]
    %v727 = vld [vmem:[%s4 + $0x20] sm:$0xff]
    %v728 = vld [vmem:[%s4 + $0x28] sm:$0xff]
    %v729 = vld [vmem:[%s4 + $0x30] sm:$0xff]
    %v730 = vld [vmem:[%s4 + $0x38] sm:$0xff]
    %v731 = vld [vmem:[%s4 + $0x40] sm:$0xff]
    %v732 = vld [vmem:[%s4 + $0x48] sm:$0xff]
    %v733 = vld [vmem:[%s4 + $0x50] sm:$0xff]
    %v734 = vld [vmem:[%s4 + $0x58] sm:$0xff]
    %v735 = vld [vmem:[%s4 + $0x60] sm:$0xff]
    %v736 = vld [vmem:[%s4 + $0x68] sm:$0xff]
    %v737 = vld [vmem:[%s4 + $0x70] sm:$0xff]
    %v738 = vld [vmem:[%s4 + $0x78] sm:$0xff]
    %v739 = vld [vmem:[%s4 + $0x80] sm:$0xff]
    %v740 = vld [vmem:[%s4 + $0x88] sm:$0xff]
    %v741 = vld [vmem:[%s4 + $0x90] sm:$0xff]
    %v742 = vld [vmem:[%s4 + $0x98] sm:$0xff]
    %v743 = vld [vmem:[%s4 + $0xa0] sm:$0xff]
    %v744 = vld [vmem:[%s4 + $0xa8] sm:$0xff]
    %v745 = vld [vmem:[%s4 + $0xb0] sm:$0xff]
    %v746 = vld [vmem:[%s4 + $0xb8] sm:$0xff]
    %v747 = vld [vmem:[%s4 + $0xc0] sm:$0xff]
    %v748 = vld [vmem:[%s4 + $0xc8] sm:$0xff]
    %v749 = vld [vmem:[%s4 + $0xd0] sm:$0xff]
    %v750 = vld [vmem:[%s4 + $0xd8] sm:$0xff]
    %v751 = vld [vmem:[%s4 + $0xe0] sm:$0xff]
    %v752 = vld [vmem:[%s4 + $0xe8] sm:$0xff]
    %v753 = vld [vmem:[%s4 + $0xf0] sm:$0xff]
    %v754 = vld [vmem:[%s4 + $0xf8] sm:$0xff]
    %756 = vset.pattern.permute.xlu0 0
    %757 = vperm.xlu0 %756, %v723
    %v758 = vpop.permute.xlu0 %757
    %761 = vset.pattern.permute.xlu0 0
    %762 = vperm.xlu0 %761, %v724
    %v763 = vpop.permute.xlu0 %762
    %766 = vset.pattern.permute.xlu0 0
    %767 = vperm.xlu0 %766, %v725
    %v768 = vpop.permute.xlu0 %767
    %771 = vset.pattern.permute.xlu0 0
    %772 = vperm.xlu0 %771, %v726
    %v773 = vpop.permute.xlu0 %772
    %776 = vset.pattern.permute.xlu0 0
    %777 = vperm.xlu0 %776, %v727
    %v778 = vpop.permute.xlu0 %777
    %781 = vset.pattern.permute.xlu0 0
    %782 = vperm.xlu0 %781, %v728
    %v783 = vpop.permute.xlu0 %782
    %786 = vset.pattern.permute.xlu0 0
    %787 = vperm.xlu0 %786, %v729
    %v788 = vpop.permute.xlu0 %787
    %791 = vset.pattern.permute.xlu0 0
    %792 = vperm.xlu0 %791, %v730
    %v793 = vpop.permute.xlu0 %792
    %796 = vset.pattern.permute.xlu0 0
    %797 = vperm.xlu0 %796, %v731
    %v798 = vpop.permute.xlu0 %797
    %801 = vset.pattern.permute.xlu0 0
    %802 = vperm.xlu0 %801, %v732
    %v803 = vpop.permute.xlu0 %802
    %806 = vset.pattern.permute.xlu0 0
    %807 = vperm.xlu0 %806, %v733
    %v808 = vpop.permute.xlu0 %807
    %811 = vset.pattern.permute.xlu0 0
    %812 = vperm.xlu0 %811, %v734
    %v813 = vpop.permute.xlu0 %812
    %816 = vset.pattern.permute.xlu0 0
    %817 = vperm.xlu0 %816, %v735
    %v818 = vpop.permute.xlu0 %817
    %821 = vset.pattern.permute.xlu0 0
    %822 = vperm.xlu0 %821, %v736
    %v823 = vpop.permute.xlu0 %822
    %826 = vset.pattern.permute.xlu0 0
    %827 = vperm.xlu0 %826, %v737
    %v828 = vpop.permute.xlu0 %827
    %831 = vset.pattern.permute.xlu0 0
    %832 = vperm.xlu0 %831, %v738
    %v833 = vpop.permute.xlu0 %832
    %836 = vset.pattern.permute.xlu0 0
    %837 = vperm.xlu0 %836, %v739
    %v838 = vpop.permute.xlu0 %837
    %841 = vset.pattern.permute.xlu0 0
    %842 = vperm.xlu0 %841, %v740
    %v843 = vpop.permute.xlu0 %842
    %846 = vset.pattern.permute.xlu0 0
    %847 = vperm.xlu0 %846, %v741
    %v848 = vpop.permute.xlu0 %847
    %851 = vset.pattern.permute.xlu0 0
    %852 = vperm.xlu0 %851, %v742
    %v853 = vpop.permute.xlu0 %852
    %856 = vset.pattern.permute.xlu0 0
    %857 = vperm.xlu0 %856, %v743
    %v858 = vpop.permute.xlu0 %857
    %861 = vset.pattern.permute.xlu0 0
    %862 = vperm.xlu0 %861, %v744
    %v863 = vpop.permute.xlu0 %862
    %866 = vset.pattern.permute.xlu0 0
    %867 = vperm.xlu0 %866, %v745
    %v868 = vpop.permute.xlu0 %867
    %871 = vset.pattern.permute.xlu0 0
    %872 = vperm.xlu0 %871, %v746
    %v873 = vpop.permute.xlu0 %872
    %876 = vset.pattern.permute.xlu0 0
    %877 = vperm.xlu0 %876, %v747
    %v878 = vpop.permute.xlu0 %877
    %881 = vset.pattern.permute.xlu0 0
    %882 = vperm.xlu0 %881, %v748
    %v883 = vpop.permute.xlu0 %882
    %886 = vset.pattern.permute.xlu0 0
    %887 = vperm.xlu0 %886, %v749
    %v888 = vpop.permute.xlu0 %887
    %891 = vset.pattern.permute.xlu0 0
    %892 = vperm.xlu0 %891, %v750
    %v893 = vpop.permute.xlu0 %892
    %896 = vset.pattern.permute.xlu0 0
    %897 = vperm.xlu0 %896, %v751
    %v898 = vpop.permute.xlu0 %897
    %901 = vset.pattern.permute.xlu0 0
    %902 = vperm.xlu0 %901, %v752
    %v903 = vpop.permute.xlu0 %902
    %906 = vset.pattern.permute.xlu0 0
    %907 = vperm.xlu0 %906, %v753
    %v908 = vpop.permute.xlu0 %907
    %911 = vset.pattern.permute.xlu0 0
    %912 = vperm.xlu0 %911, %v754
    %v913 = vpop.permute.xlu0 %912
    %v947 = vunpack.c.l.b16 %v659
    %v948 = vunpack.c.h.b16 %v659
    %v949 = vunpack.c.l.b16 %v660
    %v950 = vunpack.c.h.b16 %v660
    %v951 = vunpack.c.l.b16 %v661
    %v952 = vunpack.c.h.b16 %v661
    %v953 = vunpack.c.l.b16 %v662
    %v954 = vunpack.c.h.b16 %v662
    %v955 = vunpack.c.l.b16 %v663
    %v956 = vunpack.c.h.b16 %v663
    %v957 = vunpack.c.l.b16 %v664
    %v958 = vunpack.c.h.b16 %v664
    %v959 = vunpack.c.l.b16 %v665
    %v960 = vunpack.c.h.b16 %v665
    %v961 = vunpack.c.l.b16 %v666
    %v962 = vunpack.c.h.b16 %v666
    %v963 = vunpack.c.l.b16 %v667
    %v964 = vunpack.c.h.b16 %v667
    %v965 = vunpack.c.l.b16 %v668
    %v966 = vunpack.c.h.b16 %v668
    %v967 = vunpack.c.l.b16 %v669
    %v968 = vunpack.c.h.b16 %v669
    %v969 = vunpack.c.l.b16 %v670
    %v970 = vunpack.c.h.b16 %v670
    %v971 = vunpack.c.l.b16 %v671
    %v972 = vunpack.c.h.b16 %v671
    %v973 = vunpack.c.l.b16 %v672
    %v974 = vunpack.c.h.b16 %v672
    %v975 = vunpack.c.l.b16 %v673
    %v976 = vunpack.c.h.b16 %v673
    %v977 = vunpack.c.l.b16 %v674
    %v978 = vunpack.c.h.b16 %v674
    %v979 = vunpack.c.l.b16 %v675
    %v980 = vunpack.c.h.b16 %v675
    %v981 = vunpack.c.l.b16 %v676
    %v982 = vunpack.c.h.b16 %v676
    %v983 = vunpack.c.l.b16 %v677
    %v984 = vunpack.c.h.b16 %v677
    %v985 = vunpack.c.l.b16 %v678
    %v986 = vunpack.c.h.b16 %v678
    %v987 = vunpack.c.l.b16 %v679
    %v988 = vunpack.c.h.b16 %v679
    %v989 = vunpack.c.l.b16 %v680
    %v990 = vunpack.c.h.b16 %v680
    %v991 = vunpack.c.l.b16 %v681
    %v992 = vunpack.c.h.b16 %v681
    %v993 = vunpack.c.l.b16 %v682
    %v994 = vunpack.c.h.b16 %v682
    %v995 = vunpack.c.l.b16 %v683
    %v996 = vunpack.c.h.b16 %v683
    %v997 = vunpack.c.l.b16 %v684
    %v998 = vunpack.c.h.b16 %v684
    %v999 = vunpack.c.l.b16 %v685
    %v1000 = vunpack.c.h.b16 %v685
    %v1001 = vunpack.c.l.b16 %v686
    %v1002 = vunpack.c.h.b16 %v686
    %v1003 = vunpack.c.l.b16 %v687
    %v1004 = vunpack.c.h.b16 %v687
    %v1005 = vunpack.c.l.b16 %v688
    %v1006 = vunpack.c.h.b16 %v688
    %v1007 = vunpack.c.l.b16 %v689
    %v1008 = vunpack.c.h.b16 %v689
    %v1009 = vunpack.c.l.b16 %v690
    %v1010 = vunpack.c.h.b16 %v690
    %v1011 = vpack.c.b16 %v949, %v947
    %v1012 = vpack.c.b16 %v950, %v948
    %v1013 = vpack.c.b16 %v953, %v951
    %v1014 = vpack.c.b16 %v954, %v952
    %v1015 = vpack.c.b16 %v957, %v955
    %v1016 = vpack.c.b16 %v958, %v956
    %v1017 = vpack.c.b16 %v961, %v959
    %v1018 = vpack.c.b16 %v962, %v960
    %v1019 = vpack.c.b16 %v965, %v963
    %v1020 = vpack.c.b16 %v966, %v964
    %v1021 = vpack.c.b16 %v969, %v967
    %v1022 = vpack.c.b16 %v970, %v968
    %v1023 = vpack.c.b16 %v973, %v971
    %v1024 = vpack.c.b16 %v974, %v972
    %v1025 = vpack.c.b16 %v977, %v975
    %v1026 = vpack.c.b16 %v978, %v976
    %v1027 = vpack.c.b16 %v981, %v979
    %v1028 = vpack.c.b16 %v982, %v980
    %v1029 = vpack.c.b16 %v985, %v983
    %v1030 = vpack.c.b16 %v986, %v984
    %v1031 = vpack.c.b16 %v989, %v987
    %v1032 = vpack.c.b16 %v990, %v988
    %v1033 = vpack.c.b16 %v993, %v991
    %v1034 = vpack.c.b16 %v994, %v992
    %v1035 = vpack.c.b16 %v997, %v995
    %v1036 = vpack.c.b16 %v998, %v996
    %v1037 = vpack.c.b16 %v1001, %v999
    %v1038 = vpack.c.b16 %v1002, %v1000
    %v1039 = vpack.c.b16 %v1005, %v1003
    %v1040 = vpack.c.b16 %v1006, %v1004
    %v1041 = vpack.c.b16 %v1009, %v1007
    %v1042 = vpack.c.b16 %v1010, %v1008
    %1075 = vmatprep.subr.bf16.mxu0 %v692
    %1076 = vmatpush1.bf16.msra.mxu0 %v691
    %1077 = vmatprep.subr.bf16.mxu0 %v694
    %1078 = vmatpush1.bf16.msra.mxu0 %v693
    %1079 = vmatprep.subr.bf16.mxu0 %v696
    %1080 = vmatpush1.bf16.msra.mxu0 %v695
    %1081 = vmatprep.subr.bf16.mxu0 %v698
    %1082 = vmatpush1.bf16.msra.mxu0 %v697
    %1083 = vmatprep.subr.bf16.mxu0 %v700
    %1084 = vmatpush1.bf16.msra.mxu0 %v699
    %1085 = vmatprep.subr.bf16.mxu0 %v702
    %1086 = vmatpush1.bf16.msra.mxu0 %v701
    %1087 = vmatprep.subr.bf16.mxu0 %v704
    %1088 = vmatpush1.bf16.msra.mxu0 %v703
    %1089 = vmatprep.subr.bf16.mxu0 %v706
    %1090 = vmatpush1.bf16.msra.mxu0 %v705
    %1091 = vmatprep.subr.bf16.mxu0 %v708
    %1092 = vmatpush1.bf16.msra.mxu0 %v707
    %1093 = vmatprep.subr.bf16.mxu0 %v710
    %1094 = vmatpush1.bf16.msra.mxu0 %v709
    %1095 = vmatprep.subr.bf16.mxu0 %v712
    %1096 = vmatpush1.bf16.msra.mxu0 %v711
    %1097 = vmatprep.subr.bf16.mxu0 %v714
    %1098 = vmatpush1.bf16.msra.mxu0 %v713
    %1099 = vmatprep.subr.bf16.mxu0 %v716
    %1100 = vmatpush1.bf16.msra.mxu0 %v715
    %1101 = vmatprep.subr.bf16.mxu0 %v718
    %1102 = vmatpush1.bf16.msra.mxu0 %v717
    %1103 = vmatprep.subr.bf16.mxu0 %v720
    %1104 = vmatpush1.bf16.msra.mxu0 %v719
    %1105 = vmatprep.subr.bf16.mxu0 %v722
    %1106 = vmatpush1.bf16.msra.mxu0 %v721
    %1107 = vmatprep.mubr.bf16.mxu0 %v1012
    %1108 = vmatmul.mubr.bf16.gmra.mrb[0].mxu0 %v1011
    %v1109 = vpop.f32.mrb[0].mxu0
    %v1110 = vadd.f32 %v758, %v1109
    %v1111 = vpop.f32.mrb[0].mxu0
    %v1112 = vadd.f32 %v758, %v1111
    %v1113 = vpop.f32.mrb[0].mxu0
    %v1114 = vadd.f32 %v763, %v1113
    %v1115 = vpop.f32.mrb[0].mxu0
    %v1116 = vadd.f32 %v763, %v1115
    %1117 = vmatprep.mubr.bf16.mxu0 %v1014
    %1118 = vmatmul.mubr.bf16.gmra.mrb[0].mxu0 %v1013
    %v1119 = vpop.f32.mrb[0].mxu0
    %v1120 = vadd.f32 %v768, %v1119
    %v1121 = vpop.f32.mrb[0].mxu0
    %v1122 = vadd.f32 %v768, %v1121
    %v1123 = vpop.f32.mrb[0].mxu0
    %v1124 = vadd.f32 %v773, %v1123
    %v1125 = vpop.f32.mrb[0].mxu0
    %v1126 = vadd.f32 %v773, %v1125
    %1127 = vmatprep.mubr.bf16.mxu0 %v1016
    %1128 = vmatmul.mubr.bf16.gmra.mrb[0].mxu0 %v1015
    %v1129 = vpop.f32.mrb[0].mxu0
    %v1130 = vadd.f32 %v778, %v1129
    %v1131 = vpop.f32.mrb[0].mxu0
    %v1132 = vadd.f32 %v778, %v1131
    %v1133 = vpop.f32.mrb[0].mxu0
    %v1134 = vadd.f32 %v783, %v1133
    %v1135 = vpop.f32.mrb[0].mxu0
    %v1136 = vadd.f32 %v783, %v1135
    %1137 = vmatprep.mubr.bf16.mxu0 %v1018
    %1138 = vmatmul.mubr.bf16.gmra.mrb[0].mxu0 %v1017
    %v1139 = vpop.f32.mrb[0].mxu0
    %v1140 = vadd.f32 %v788, %v1139
    %v1141 = vpop.f32.mrb[0].mxu0
    %v1142 = vadd.f32 %v788, %v1141
    %v1143 = vpop.f32.mrb[0].mxu0
    %v1144 = vadd.f32 %v793, %v1143
    %v1145 = vpop.f32.mrb[0].mxu0
    %v1146 = vadd.f32 %v793, %v1145
    %1147 = vmatprep.mubr.bf16.mxu0 %v1020
    %1148 = vmatmul.mubr.bf16.gmra.mrb[0].mxu0 %v1019
    %v1149 = vpop.f32.mrb[0].mxu0
    %v1150 = vadd.f32 %v798, %v1149
    %v1151 = vpop.f32.mrb[0].mxu0
    %v1152 = vadd.f32 %v798, %v1151
    %v1153 = vpop.f32.mrb[0].mxu0
    %v1154 = vadd.f32 %v803, %v1153
    %v1155 = vpop.f32.mrb[0].mxu0
    %v1156 = vadd.f32 %v803, %v1155
    %1157 = vmatprep.mubr.bf16.mxu0 %v1022
    %1158 = vmatmul.mubr.bf16.gmra.mrb[0].mxu0 %v1021
    %v1159 = vpop.f32.mrb[0].mxu0
    %v1160 = vadd.f32 %v808, %v1159
    %v1161 = vpop.f32.mrb[0].mxu0
    %v1162 = vadd.f32 %v808, %v1161
    %v1163 = vpop.f32.mrb[0].mxu0
    %v1164 = vadd.f32 %v813, %v1163
    %v1165 = vpop.f32.mrb[0].mxu0
    %v1166 = vadd.f32 %v813, %v1165
    %1167 = vmatprep.mubr.bf16.mxu0 %v1024
    %1168 = vmatmul.mubr.bf16.gmra.mrb[0].mxu0 %v1023
    %v1169 = vpop.f32.mrb[0].mxu0
    %v1170 = vadd.f32 %v818, %v1169
    %v1171 = vpop.f32.mrb[0].mxu0
    %v1172 = vadd.f32 %v818, %v1171
    %v1173 = vpop.f32.mrb[0].mxu0
    %v1174 = vadd.f32 %v823, %v1173
    %v1175 = vpop.f32.mrb[0].mxu0
    %v1176 = vadd.f32 %v823, %v1175
    %1177 = vmatprep.mubr.bf16.mxu0 %v1026
    %1178 = vmatmul.mubr.bf16.gmra.mrb[0].mxu0 %v1025
    %v1179 = vpop.f32.mrb[0].mxu0
    %v1180 = vadd.f32 %v828, %v1179
    %v1181 = vpop.f32.mrb[0].mxu0
    %v1182 = vadd.f32 %v828, %v1181
    %v1183 = vpop.f32.mrb[0].mxu0
    %v1184 = vadd.f32 %v833, %v1183
    %v1185 = vpop.f32.mrb[0].mxu0
    %v1186 = vadd.f32 %v833, %v1185
    %1187 = vmatprep.mubr.bf16.mxu0 %v1028
    %1188 = vmatmul.mubr.bf16.gmra.mrb[0].mxu0 %v1027
    %v1189 = vpop.f32.mrb[0].mxu0
    %v1190 = vadd.f32 %v838, %v1189
    %v1191 = vpop.f32.mrb[0].mxu0
    %v1192 = vadd.f32 %v838, %v1191
    %v1193 = vpop.f32.mrb[0].mxu0
    %v1194 = vadd.f32 %v843, %v1193
    %v1195 = vpop.f32.mrb[0].mxu0
    %v1196 = vadd.f32 %v843, %v1195
    %1197 = vmatprep.mubr.bf16.mxu0 %v1030
    %1198 = vmatmul.mubr.bf16.gmra.mrb[0].mxu0 %v1029
    %v1199 = vpop.f32.mrb[0].mxu0
    %v1200 = vadd.f32 %v848, %v1199
    %v1201 = vpop.f32.mrb[0].mxu0
    %v1202 = vadd.f32 %v848, %v1201
    %v1203 = vpop.f32.mrb[0].mxu0
    %v1204 = vadd.f32 %v853, %v1203
    %v1205 = vpop.f32.mrb[0].mxu0
    %v1206 = vadd.f32 %v853, %v1205
    %1207 = vmatprep.mubr.bf16.mxu0 %v1032
    %1208 = vmatmul.mubr.bf16.gmra.mrb[0].mxu0 %v1031
    %v1209 = vpop.f32.mrb[0].mxu0
    %v1210 = vadd.f32 %v858, %v1209
    %v1211 = vpop.f32.mrb[0].mxu0
    %v1212 = vadd.f32 %v858, %v1211
    %v1213 = vpop.f32.mrb[0].mxu0
    %v1214 = vadd.f32 %v863, %v1213
    %v1215 = vpop.f32.mrb[0].mxu0
    %v1216 = vadd.f32 %v863, %v1215
    %1217 = vmatprep.mubr.bf16.mxu0 %v1034
    %1218 = vmatmul.mubr.bf16.gmra.mrb[0].mxu0 %v1033
    %v1219 = vpop.f32.mrb[0].mxu0
    %v1220 = vadd.f32 %v868, %v1219
    %v1221 = vpop.f32.mrb[0].mxu0
    %v1222 = vadd.f32 %v868, %v1221
    %v1223 = vpop.f32.mrb[0].mxu0
    %v1224 = vadd.f32 %v873, %v1223
    %v1225 = vpop.f32.mrb[0].mxu0
    %v1226 = vadd.f32 %v873, %v1225
    %1227 = vmatprep.mubr.bf16.mxu0 %v1036
    %1228 = vmatmul.mubr.bf16.gmra.mrb[0].mxu0 %v1035
    %v1229 = vpop.f32.mrb[0].mxu0
    %v1230 = vadd.f32 %v878, %v1229
    %v1231 = vpop.f32.mrb[0].mxu0
    %v1232 = vadd.f32 %v878, %v1231
    %v1233 = vpop.f32.mrb[0].mxu0
    %v1234 = vadd.f32 %v883, %v1233
    %v1235 = vpop.f32.mrb[0].mxu0
    %v1236 = vadd.f32 %v883, %v1235
    %1237 = vmatprep.mubr.bf16.mxu0 %v1038
    %1238 = vmatmul.mubr.bf16.gmra.mrb[0].mxu0 %v1037
    %v1239 = vpop.f32.mrb[0].mxu0
    %v1240 = vadd.f32 %v888, %v1239
    %v1241 = vpop.f32.mrb[0].mxu0
    %v1242 = vadd.f32 %v888, %v1241
    %v1243 = vpop.f32.mrb[0].mxu0
    %v1244 = vadd.f32 %v893, %v1243
    %v1245 = vpop.f32.mrb[0].mxu0
    %v1246 = vadd.f32 %v893, %v1245
    %1247 = vmatprep.mubr.bf16.mxu0 %v1040
    %1248 = vmatmul.mubr.bf16.gmra.mrb[0].mxu0 %v1039
    %v1249 = vpop.f32.mrb[0].mxu0
    %v1250 = vadd.f32 %v898, %v1249
    %v1251 = vpop.f32.mrb[0].mxu0
    %v1252 = vadd.f32 %v898, %v1251
    %v1253 = vpop.f32.mrb[0].mxu0
    %v1254 = vadd.f32 %v903, %v1253
    %v1255 = vpop.f32.mrb[0].mxu0
    %v1256 = vadd.f32 %v903, %v1255
    %1257 = vmatprep.mubr.bf16.mxu0 %v1042
    %1258 = vmatmul.mubr.bf16.gmra.mrb[0].mxu0 %v1041
    %v1259 = vpop.f32.mrb[0].mxu0
    %v1260 = vadd.f32 %v908, %v1259
    %v1261 = vpop.f32.mrb[0].mxu0
    %v1262 = vadd.f32 %v908, %v1261
    %v1263 = vpop.f32.mrb[0].mxu0
    %v1264 = vadd.f32 %v913, %v1263
    %v1265 = vpop.f32.mrb[0].mxu0
    %v1266 = vadd.f32 %v913, %v1265
    %1267 = vdwg.mxu0
    %v1268 = vmax.f32 %v1110, 0.0
    %v1269 = vmax.f32 %v1112, 0.0
    %v1270 = vmax.f32 %v1114, 0.0
    %v1271 = vmax.f32 %v1116, 0.0
    %v1272 = vmax.f32 %v1120, 0.0
    %v1273 = vmax.f32 %v1122, 0.0
    %v1274 = vmax.f32 %v1124, 0.0
    %v1275 = vmax.f32 %v1126, 0.0
    %v1276 = vmax.f32 %v1130, 0.0
    %v1277 = vmax.f32 %v1132, 0.0
    %v1278 = vmax.f32 %v1134, 0.0
    %v1279 = vmax.f32 %v1136, 0.0
    %v1280 = vmax.f32 %v1140, 0.0
    %v1281 = vmax.f32 %v1142, 0.0
    %v1282 = vmax.f32 %v1144, 0.0
    %v1283 = vmax.f32 %v1146, 0.0
    %v1284 = vmax.f32 %v1150, 0.0
    %v1285 = vmax.f32 %v1152, 0.0
    %v1286 = vmax.f32 %v1154, 0.0
    %v1287 = vmax.f32 %v1156, 0.0
    %v1288 = vmax.f32 %v1160, 0.0
    %v1289 = vmax.f32 %v1162, 0.0
    %v1290 = vmax.f32 %v1164, 0.0
    %v1291 = vmax.f32 %v1166, 0.0
    %v1292 = vmax.f32 %v1170, 0.0
    %v1293 = vmax.f32 %v1172, 0.0
    %v1294 = vmax.f32 %v1174, 0.0
    %v1295 = vmax.f32 %v1176, 0.0
    %v1296 = vmax.f32 %v1180, 0.0
    %v1297 = vmax.f32 %v1182, 0.0
    %v1298 = vmax.f32 %v1184, 0.0
    %v1299 = vmax.f32 %v1186, 0.0
    %v1300 = vmax.f32 %v1190, 0.0
    %v1301 = vmax.f32 %v1192, 0.0
    %v1302 = vmax.f32 %v1194, 0.0
    %v1303 = vmax.f32 %v1196, 0.0
    %v1304 = vmax.f32 %v1200, 0.0
    %v1305 = vmax.f32 %v1202, 0.0
    %v1306 = vmax.f32 %v1204, 0.0
    %v1307 = vmax.f32 %v1206, 0.0
    %v1308 = vmax.f32 %v1210, 0.0
    %v1309 = vmax.f32 %v1212, 0.0
    %v1310 = vmax.f32 %v1214, 0.0
    %v1311 = vmax.f32 %v1216, 0.0
    %v1312 = vmax.f32 %v1220, 0.0
    %v1313 = vmax.f32 %v1222, 0.0
    %v1314 = vmax.f32 %v1224, 0.0
    %v1315 = vmax.f32 %v1226, 0.0
    %v1316 = vmax.f32 %v1230, 0.0
    %v1317 = vmax.f32 %v1232, 0.0
    %v1318 = vmax.f32 %v1234, 0.0
    %v1319 = vmax.f32 %v1236, 0.0
    %v1320 = vmax.f32 %v1240, 0.0
    %v1321 = vmax.f32 %v1242, 0.0
    %v1322 = vmax.f32 %v1244, 0.0
    %v1323 = vmax.f32 %v1246, 0.0
    %v1324 = vmax.f32 %v1250, 0.0
    %v1325 = vmax.f32 %v1252, 0.0
    %v1326 = vmax.f32 %v1254, 0.0
    %v1327 = vmax.f32 %v1256, 0.0
    %v1328 = vmax.f32 %v1260, 0.0
    %v1329 = vmax.f32 %v1262, 0.0
    %v1330 = vmax.f32 %v1264, 0.0
    %v1331 = vmax.f32 %v1266, 0.0
    %v1332 = vld [vmem:[%s5] sm:$0xff]
    %v1333 = vld [vmem:[%s5 + $0x8] sm:$0x11]
    %v1334 = vpack.c.bf16 %v1270, %v1268
    %v1335 = vpack.c.bf16 %v1271, %v1269
    %v1336 = vpack.c.bf16 %v1274, %v1272
    %v1337 = vpack.c.bf16 %v1275, %v1273
    %v1338 = vpack.c.bf16 %v1278, %v1276
    %v1339 = vpack.c.bf16 %v1279, %v1277
    %v1340 = vpack.c.bf16 %v1282, %v1280
    %v1341 = vpack.c.bf16 %v1283, %v1281
    %v1342 = vpack.c.bf16 %v1286, %v1284
    %v1343 = vpack.c.bf16 %v1287, %v1285
    %v1344 = vpack.c.bf16 %v1290, %v1288
    %v1345 = vpack.c.bf16 %v1291, %v1289
    %v1346 = vpack.c.bf16 %v1294, %v1292
    %v1347 = vpack.c.bf16 %v1295, %v1293
    %v1348 = vpack.c.bf16 %v1298, %v1296
    %v1349 = vpack.c.bf16 %v1299, %v1297
    %v1350 = vpack.c.bf16 %v1302, %v1300
    %v1351 = vpack.c.bf16 %v1303, %v1301
    %v1352 = vpack.c.bf16 %v1306, %v1304
    %v1353 = vpack.c.bf16 %v1307, %v1305
    %v1354 = vpack.c.bf16 %v1310, %v1308
    %v1355 = vpack.c.bf16 %v1311, %v1309
    %v1356 = vpack.c.bf16 %v1314, %v1312
    %v1357 = vpack.c.bf16 %v1315, %v1313
    %v1358 = vpack.c.bf16 %v1318, %v1316
    %v1359 = vpack.c.bf16 %v1319, %v1317
    %v1360 = vpack.c.bf16 %v1322, %v1320
    %v1361 = vpack.c.bf16 %v1323, %v1321
    %v1362 = vpack.c.bf16 %v1326, %v1324
    %v1363 = vpack.c.bf16 %v1327, %v1325
    %v1364 = vpack.c.bf16 %v1330, %v1328
    %v1365 = vpack.c.bf16 %v1331, %v1329
    %v1366 = vld [vmem:[%s6] sm:$0xff]
    %v1367 = vld [vmem:[%s6 + $0x8] sm:$0x3]
    %1369 = vset.pattern.permute.xlu0 0
    %1370 = vperm.xlu0 %1369, %v1366
    %v1371 = vpop.permute.xlu0 %1370
    %1374 = vset.pattern.permute.xlu0 0
    %1375 = vperm.xlu0 %1374, %v1367
    %v1376 = vpop.permute.xlu0 %1375
    %v1380 = vunpack.c.l.b16 %v1332
    %v1381 = vunpack.c.h.b16 %v1332
    %v1382 = vunpack.c.l.b16 %v1333
    %v1383 = vunpack.c.h.b16 %v1333
    %v1384 = vpack.c.b16 %v1382, %v1380
    %v1385 = vpack.c.b16 %v1383, %v1381
    %1388 = vmatprep.subr.bf16.mxu0 %v1335
    %1389 = vmatpush1.bf16.msra.mxu0 %v1334
    %1390 = vmatprep.subr.bf16.mxu0 %v1337
    %1391 = vmatpush1.bf16.msra.mxu0 %v1336
    %1392 = vmatprep.subr.bf16.mxu0 %v1339
    %1393 = vmatpush1.bf16.msra.mxu0 %v1338
    %1394 = vmatprep.subr.bf16.mxu0 %v1341
    %1395 = vmatpush1.bf16.msra.mxu0 %v1340
    %1396 = vmatprep.subr.bf16.mxu0 %v1343
    %1397 = vmatpush1.bf16.msra.mxu0 %v1342
    %1398 = vmatprep.subr.bf16.mxu0 %v1345
    %1399 = vmatpush1.bf16.msra.mxu0 %v1344
    %1400 = vmatprep.subr.bf16.mxu0 %v1347
    %1401 = vmatpush1.bf16.msra.mxu0 %v1346
    %1402 = vmatprep.subr.bf16.mxu0 %v1349
    %1403 = vmatpush1.bf16.msra.mxu0 %v1348
    %1404 = vmatprep.subr.bf16.mxu0 %v1351
    %1405 = vmatpush1.bf16.msra.mxu0 %v1350
    %1406 = vmatprep.subr.bf16.mxu0 %v1353
    %1407 = vmatpush1.bf16.msra.mxu0 %v1352
    %1408 = vmatprep.subr.bf16.mxu0 %v1355
    %1409 = vmatpush1.bf16.msra.mxu0 %v1354
    %1410 = vmatprep.subr.bf16.mxu0 %v1357
    %1411 = vmatpush1.bf16.msra.mxu0 %v1356
    %1412 = vmatprep.subr.bf16.mxu0 %v1359
    %1413 = vmatpush1.bf16.msra.mxu0 %v1358
    %1414 = vmatprep.subr.bf16.mxu0 %v1361
    %1415 = vmatpush1.bf16.msra.mxu0 %v1360
    %1416 = vmatprep.subr.bf16.mxu0 %v1363
    %1417 = vmatpush1.bf16.msra.mxu0 %v1362
    %1418 = vmatprep.subr.bf16.mxu0 %v1365
    %1419 = vmatpush1.bf16.msra.mxu0 %v1364
    %1420 = vmatprep.mubr.bf16.mxu0 %v1385
    %1421 = vmatmul.mubr.bf16.gmra.mrb[0].mxu0 %v1384
    %v1422 = vpop.f32.mrb[0].mxu0
    %v1423 = vadd.f32 %v1371, %v1422
    %v1424 = vpop.f32.mrb[0].mxu0
    %v1425 = vadd.f32 %v1371, %v1424
    %v1426 = vpop.f32.mrb[0].mxu0
    %v1427 = vadd.f32 %v1376, %v1426
    %v1428 = vpop.f32.mrb[0].mxu0
    %v1429 = vadd.f32 %v1376, %v1428
    %1430 = vdwg.mxu0
    %v1431 = vmax.f32 %v1423, 0.0
    %v1432 = vmax.f32 %v1425, 0.0
    %v1433 = vmax.f32 %v1427, 0.0
    %v1434 = vmax.f32 %v1429, 0.0
    %v1435 = vld [vmem:[%s7] sm:$0xff]
    %v1436 = vld [vmem:[%s7 + $0x8] sm:$0x3]
    %1438 = vset.pattern.permute.xlu0 0
    %1439 = vperm.xlu0 %1438, %v1435
    %v1440 = vpop.permute.xlu0 %1439
    %1443 = vset.pattern.permute.xlu0 0
    %1444 = vperm.xlu0 %1443, %v1436
    %v1445 = vpop.permute.xlu0 %1444
    %v1447 = vmul.f32 %v1431, %v1440
    %v1448 = vmul.f32 %v1432, %v1440
    %v1449 = vmul.f32 %v1433, %v1445
    %v1450 = vmul.f32 %v1434, %v1445
    %vm1451 = vcmask 1041408
    %v1452 = vsel %vm1451, %v1449, 0.0
    %v1453 = vadd.f32 %v1447, %v1452
    %v1454 = vrot.slane %v1453, 4
    %v1455 = vadd.f32 %v1453, %v1454
    %v1456 = vrot.slane %v1455, 2
    %v1457 = vadd.f32 %v1455, %v1456
    %v1458 = vrot.slane %v1457, 1
    %v1459 = vadd.f32 %v1457, %v1458
    %v1460 = vsel %vm1451, %v1450, 0.0
    %v1461 = vadd.f32 %v1448, %v1460
    %v1462 = vrot.slane %v1461, 4
    %v1463 = vadd.f32 %v1461, %v1462
    %v1464 = vrot.slane %v1463, 2
    %v1465 = vadd.f32 %v1463, %v1464
    %v1466 = vrot.slane %v1465, 1
    %v1467 = vadd.f32 %v1465, %v1466
    %v1468 = vld [vmem:[#allocation2] sm:$0x1]
    %1470 = vset.pattern.permute.xlu0 0
    %1471 = vperm.xlu0 %1470, %v1468
    %v1472 = vpop.permute.xlu0 %1471
    %v1474 = vlaneseq
    %v1475 = vshrl.u32 %v1474, 7
    %v1476 = vsub.s32 0, %v1475
    %v1477 = vrot.slane %v1472, %v1476
    %v1478 = vadd.f32 %v1459, %v1477
    %v1479 = vadd.f32 %v1467, %v1477
    %v1482 = vcombine.low %v1478, %v1479
    %v1484 = vunpack.c.l.s4 1966171168
    %v1485 = vunpack.c.0.s8 %v1484
    %v1486 = vlaneseq
    %v1487 = vshrl.u32 %v1486, 7
    %v1488 = vsub.s32 %v1485, %v1487
    %v1489 = vrot.slane %v1482, %v1488
    %v1491 = vunpack.c.l.s4 1966171168
    %v1492 = vunpack.c.0.s8 %v1491
    %v1493 = vlaneseq
    %v1494 = vshrl.u32 %v1493, 7
    %v1495 = vsub.s32 %v1492, %v1494
    %v1496 = vrot.slane %v1489, %v1495
    %v1498 = vlaneseq
    %vm1499 = vcmp.ge.s32.totalorder %v1498, 0
    %vm1500 = vcmp.lt.s32.totalorder %v1498, 256
    %vm1501 = vmand %vm1499, %vm1500
    %1502 = vst.msk [vmem:[#allocation3] sm:$0x3] %vm1501, %v1496
    // Predicated region
    $region38: #{_rob_predictor_call.1} parent=1 // pred_check
      _
    $region39: #{_rob_predictor_call.1} parent=1 // pred_check_branch
      %1504 = sbr.rel (0) target = $region41
    $region40: #{_rob_predictor_call.1} parent=1 // pred_region
      %s1506 = ssub.s32 32, 32
      %1507 = vsyncadd [#allocation4], %s1506
      %s1509 = sshll.u32 [#allocation3], 4
      %s1510 = int_to_ptr.vmem [resolvable:$true] %s1509
      %1512 = dma.vmem_to_hbm [thread:$0]  %s1510, 32, %s9, [#allocation4]
    $region41: #{_rob_predictor_call.1} parent=1 // pred_fallthru
      _
    // Predicated region
    $region42: #{_rob_predictor_call.1} parent=1 // pred_check
      _
    $region43: #{_rob_predictor_call.1} parent=1 // pred_check_branch
      %1514 = sbr.rel (0) target = $region45
    $region44: #{_rob_predictor_call.1} parent=1 // pred_region
      %1515 = dma.done [#allocation4], 32
    $region45: #{_rob_predictor_call.1} parent=1 // pred_fallthru
      _
    %1516 = vsyncpa [#allocation4], 1

</llo_original>
